<compile_context>
chip_gen: v6e
topology: v6e:2x2x1
jax: 0.10.0
libtpu: 0.0.40
codegen_flags: <defaults>
</compile_context>

<pallas_src>
import functools

import jax
import jax.numpy as jnp
import numpy as np
from jax.experimental import pallas as pl
from jax.experimental.pallas import tpu as pltpu


def _round_up(x, m):
    return (x + m - 1) // m * m


def gated_cnn_kernel(nb, lc, na,
                     al_ref,                      # scalar prefetch (SMEM): batch-max aspect len
                     xc_ref, xa_ref,              # position-major bf16 embeddings
                     w12t_ref, w12b_ref, b12_ref, # fused conv1|conv2, split top/bottom rows
                     w3t_ref, w3b_ref, b3_ref,    # conv3, split top/bottom rows
                     wfc_ref, bfc_ref,            # fc
                     out_ref):
    cp = w3t_ref.shape[1]                         # padded channel width (multiple of 128)
    al = al_ref[0]                                # batch-max aspect length (dynamic scalar)
    va = na * nb                                  # aspect pair rows computed (static bound)
    vc = lc * nb                                  # context pair rows (all real)

    # ---- conv3 (aspect branch) ------------------------------------------------
    # Rows are position-major (pos, example): position +1 == row offset +nb,
    # so both reads are tile-aligned (nb is a multiple of 8).
    at = xa_ref[pl.ds(0, va), :]
    ab = xa_ref[pl.ds(nb, va), :]
    c3 = (jnp.dot(at, w3t_ref[...], preferred_element_type=jnp.float32)
          + jnp.dot(ab, w3b_ref[...], preferred_element_type=jnp.float32)
          + b3_ref[...])                          # (va, cp)
    # valid pair rows are positions 0..al  <=>  flat rows < (al+1)*nb
    row = jax.lax.broadcasted_iota(jnp.int32, (va, cp), 0)
    c3 = jnp.where(row < (al + 1) * nb, c3, -jnp.inf)
    # tanh is strictly monotone: tanh(max(x)) == max(tanh(x))  (EUP work / na)
    aspect = jnp.tanh(jnp.max(c3.reshape(na, nb, cp), axis=0))      # (nb, cp)

    # ---- fused conv1 | conv2 (context branch) ---------------------------------
    xt = xc_ref[pl.ds(0, vc), :]
    xb = xc_ref[pl.ds(nb, vc), :]
    c12 = (jnp.dot(xt, w12t_ref[...], preferred_element_type=jnp.float32)
           + jnp.dot(xb, w12b_ref[...], preferred_element_type=jnp.float32)
           + b12_ref[...])                        # (vc, 2*cp)
    c1 = c12[:, :cp].reshape(lc, nb, cp)
    c2 = c12[:, cp:].reshape(lc, nb, cp)

    # gate1(conv1 + aspect) * gate0(conv2), max-pool over the L-1 context pairs.
    gated = jnp.maximum(c1 + aspect[None, :, :], 0.0) * jnp.tanh(c2)
    pooled = jnp.max(gated, axis=0)               # (nb, cp)

    # Final linear layer; lane-dense (nb, Pp) store.
    out_ref[...] = (jnp.dot(pooled.astype(jnp.bfloat16), wfc_ref[...],
                            preferred_element_type=jnp.float32) + bfc_ref[...])


def gated_cnn_forward(text_raw_indices, aspect_indices, params, *, batch_tile=32):
    emb_mat = params["embedding"]                       # (V, E) f32
    E = emb_mat.shape[1]
    w1, b1 = params["w1"], params["b1"]                 # (2E, C), (1, C)
    w2, b2 = params["w2"], params["b2"]
    w3, b3 = params["w3"], params["b3"]
    wfc, bfc = params["wfc"], params["bfc"]             # (C, P), (1, P)
    C = w1.shape[1]
    P = wfc.shape[1]

    N, L = text_raw_indices.shape
    La = aspect_indices.shape[1]
    assert L >= 2

    # ---- batch tile: multiple of 8; give v7x's 2 TensorCores >=2 grid steps ----
    batch_tile = _round_up(max(batch_tile, 8), 8)
    nb = max(8, min(batch_tile, _round_up(N, 8)))
    if nb == _round_up(N, 8) and N >= 16:               # whole batch fit one tile: split it
        nb = _round_up((N + 1) // 2, 8)
    assert nb % 8 == 0
    n_pad = _round_up(N, nb)
    n_blk = n_pad // nb

    Lc = L - 1                                           # context conv rows (static)
    Na = La + 1                                          # aspect conv rows upper bound
    Ep = _round_up(E, 128)                               # lane-dense contraction dim
    Cp = _round_up(C, 128)
    Pp = _round_up(P, 128)

    # Batch-max aspect length: stays on device (no host sync / per-length recompile).
    al = jnp.max(jnp.sum(aspect_indices != 0, axis=-1)).astype(jnp.int32)

    bf = jnp.bfloat16
    # Gather embeddings and cast to bf16 immediately (halves wrapper HBM traffic).
    ctx = jnp.take(emb_mat, text_raw_indices, axis=0).astype(bf)      # (N, L, E)
    asp = jnp.take(emb_mat, aspect_indices, axis=0).astype(bf)        # (N, La, E)
    # Emulate aspect_indices[:, :al]: zero embeddings at positions >= al.
    asp = jnp.where(jnp.arange(La)[None, :, None] < al, asp, 0.0)

    # Pad batch + contraction dim; aspect gets the conv3 zero row on each side.
    ctx = jnp.pad(ctx, ((0, n_pad - N), (0, 0), (0, Ep - E)))          # (n_pad, L,    Ep)
    asp = jnp.pad(asp, ((0, n_pad - N), (1, 1), (0, Ep - E)))          # (n_pad, La+2, Ep)

    # Position-major layout within each batch tile: row = pos*nb + example.
    ctx = ctx.reshape(n_blk, nb, L, Ep).transpose(0, 2, 1, 3)
    asp = asp.reshape(n_blk, nb, La + 2, Ep).transpose(0, 2, 1, 3)
    ctx_flat = ctx.reshape(n_blk * L * nb, Ep)
    asp_flat = asp.reshape(n_blk * (La + 2) * nb, Ep)

    # Split conv weights into top/bottom row halves; fuse conv1|conv2 along N;
    # zero-pad K to Ep and channels to Cp/Pp (lane-dense, no extra MXU passes).
    pad_c = lambda w: jnp.pad(w, ((0, 0), (0, Cp - C)))
    pad_k = lambda w: jnp.pad(w, ((0, Ep - E), (0, 0)))
    w12t = pad_k(jnp.concatenate([pad_c(w1[:E]), pad_c(w2[:E])], axis=1)).astype(bf)  # (Ep, 2Cp)
    w12b = pad_k(jnp.concatenate([pad_c(w1[E:]), pad_c(w2[E:])], axis=1)).astype(bf)
    b12 = jnp.concatenate([pad_c(b1), pad_c(b2)], axis=1)                              # (1, 2Cp) f32
    w3t = pad_k(pad_c(w3[:E])).astype(bf)                                              # (Ep, Cp)
    w3b = pad_k(pad_c(w3[E:])).astype(bf)
    b3p = pad_c(b3)                                                                    # (1, Cp)  f32
    wfcp = jnp.pad(wfc, ((0, Cp - C), (0, Pp - P))).astype(bf)                         # (Cp, Pp)
    bfcp = jnp.pad(bfc, ((0, 0), (0, Pp - P)))                                         # (1, Pp)  f32

    kernel = functools.partial(gated_cnn_kernel, nb, Lc, Na)
    full = lambda b, al_ref: (0, 0)

    out = pl.pallas_call(
        kernel,
        out_shape=jax.ShapeDtypeStruct((n_pad, Pp), jnp.float32),
        grid_spec=pltpu.PrefetchScalarGridSpec(
            num_scalar_prefetch=1,
            grid=(n_blk,),
            in_specs=[
                pl.BlockSpec((L * nb, Ep), lambda b, al_ref: (b, 0)),
                pl.BlockSpec(((La + 2) * nb, Ep), lambda b, al_ref: (b, 0)),
                pl.BlockSpec((Ep, 2 * Cp), full),
                pl.BlockSpec((Ep, 2 * Cp), full),
                pl.BlockSpec((1, 2 * Cp), full),
                pl.BlockSpec((Ep, Cp), full),
                pl.BlockSpec((Ep, Cp), full),
                pl.BlockSpec((1, Cp), full),
                pl.BlockSpec((Cp, Pp), full),
                pl.BlockSpec((1, Pp), full),
            ],
            out_specs=pl.BlockSpec((nb, Pp), lambda b, al_ref: (b, 0)),
        ),
        compiler_params=pltpu.CompilerParams(
            dimension_semantics=("parallel",),
            vmem_limit_bytes=48 * 1024 * 1024,   # safe on v7x's 64 MiB, fine on v5e/v6e
        ),
    )(al.reshape(1), ctx_flat, asp_flat,
      w12t, w12b, b12, w3t, w3b, b3p, wfcp, bfcp)

    return out[:N, :P]


def reference_forward(text_raw_indices, aspect_indices, params):
    """Pure-jnp reference matching the PyTorch forward semantics, with the same
    bf16-operand / f32-accumulation precision as the kernel."""
    emb_mat = params["embedding"]
    al = int(jnp.max(jnp.sum(aspect_indices != 0, axis=-1)))
    aspect_indices = aspect_indices[:, :al]
    ctx_emb = jnp.take(emb_mat, text_raw_indices, axis=0)
    asp_emb = jnp.take(emb_mat, aspect_indices, axis=0)
    xc = jnp.concatenate([ctx_emb[:, :-1, :], ctx_emb[:, 1:, :]], axis=-1)
    asp_pad = jnp.pad(asp_emb, ((0, 0), (1, 1), (0, 0)))
    xa = jnp.concatenate([asp_pad[:, :-1, :], asp_pad[:, 1:, :]], axis=-1)

    bf = jnp.bfloat16
    dot = lambda a, w: jnp.dot(a.astype(bf), w.astype(bf),
                               preferred_element_type=jnp.float32)
    c1 = dot(xc, params["w1"]) + params["b1"]
    c2 = dot(xc, params["w2"]) + params["b2"]
    c3 = dot(xa, params["w3"]) + params["b3"]
    aspect = jnp.max(jnp.tanh(c3), axis=1, keepdims=True)
    gated = jnp.maximum(c1 + aspect, 0.0) * jnp.tanh(c2)
    pooled = jnp.max(gated, axis=1)
    return dot(pooled, params["wfc"]) + params["bfc"]


if __name__ == "__main__":
    # Small, module-consistent shapes:
    N = 2               # batch
    L = 16              # max_seq_len
    LA = 6              # aspect buffer length (with zero padding)
    V = 50              # vocab size
    E = 32              # embedding dim
    C = 32              # out_channels
    P = 3               # polarities_dim

    key = jax.random.PRNGKey(0)
    keys = jax.random.split(key, 12)

    params = {
        "embedding": jax.random.normal(keys[0], (V, E), jnp.float32) * 0.1,
        "w1": jax.random.normal(keys[1], (2 * E, C), jnp.float32) * 0.1,
        "b1": jax.random.normal(keys[2], (1, C), jnp.float32) * 0.01,
        "w2": jax.random.normal(keys[3], (2 * E, C), jnp.float32) * 0.1,
        "b2": jax.random.normal(keys[4], (1, C), jnp.float32) * 0.01,
        "w3": jax.random.normal(keys[5], (2 * E, C), jnp.float32) * 0.1,
        "b3": jax.random.normal(keys[6], (1, C), jnp.float32) * 0.01,
        "wfc": jax.random.normal(keys[7], (C, P), jnp.float32) * 0.1,
        "bfc": jax.random.normal(keys[8], (1, P), jnp.float32) * 0.01,
    }

    text_raw_indices = jax.random.randint(keys[9], (N, L), 1, V, jnp.int32)
    # aspect indices: 3 and 4 nonzero tokens, rest zero-padded -> aspect_len = 4
    asp_np = np.zeros((N, LA), dtype=np.int32)
    asp_vals = np.asarray(jax.random.randint(keys[10], (N, LA), 1, V, jnp.int32))
    asp_np[0, :3] = asp_vals[0, :3]
    asp_np[1, :4] = asp_vals[1, :4]
    aspect_indices = jnp.asarray(asp_np)

    out = gated_cnn_forward(text_raw_indices, aspect_indices, params)
    out = jax.block_until_ready(out)

    ref = reference_forward(text_raw_indices, aspect_indices, params)
    np.testing.assert_allclose(np.asarray(out), np.asarray(ref),
                               rtol=1e-2, atol=5e-3)

    print("KERNEL_OK")
</pallas_src>

<mosaic_0001>
module attributes {stable_mosaic.version = 11 : i64} {
  func.func @gated_cnn_kernel(%arg0: i32, %arg1: memref<1xi32, #tpu.memory_space<smem>>, %arg2: memref<128x128xbf16, #tpu.memory_space<vmem>>, %arg3: memref<64x128xbf16, #tpu.memory_space<vmem>>, %arg4: memref<128x256xbf16, #tpu.memory_space<vmem>>, %arg5: memref<128x256xbf16, #tpu.memory_space<vmem>>, %arg6: memref<1x256xf32, #tpu.memory_space<vmem>>, %arg7: memref<128x128xbf16, #tpu.memory_space<vmem>>, %arg8: memref<128x128xbf16, #tpu.memory_space<vmem>>, %arg9: memref<1x128xf32, #tpu.memory_space<vmem>>, %arg10: memref<128x128xbf16, #tpu.memory_space<vmem>>, %arg11: memref<1x128xf32, #tpu.memory_space<vmem>>, %arg12: memref<8x128xf32, #tpu.memory_space<vmem>>) attributes {dimension_semantics = [#tpu.dimension_semantics<parallel>], iteration_bounds = array<i64: 1>, scalar_prefetch = 1 : i64, scratch_operands = 0 : i64, tpu.core_type = #tpu.core_type<tc>, window_params = [{transform_indices = @transform_0, window_bounds = array<i64: 128, 128>}, {transform_indices = @transform_1, window_bounds = array<i64: 64, 128>}, {pipeline_mode = #tpu.pipeline_mode<synchronous>, transform_indices = @transform_2, window_bounds = array<i64: 128, 256>}, {pipeline_mode = #tpu.pipeline_mode<synchronous>, transform_indices = @transform_3, window_bounds = array<i64: 128, 256>}, {pipeline_mode = #tpu.pipeline_mode<synchronous>, transform_indices = @transform_4, window_bounds = array<i64: 1, 256>}, {pipeline_mode = #tpu.pipeline_mode<synchronous>, transform_indices = @transform_5, window_bounds = array<i64: 128, 128>}, {pipeline_mode = #tpu.pipeline_mode<synchronous>, transform_indices = @transform_6, window_bounds = array<i64: 128, 128>}, {pipeline_mode = #tpu.pipeline_mode<synchronous>, transform_indices = @transform_7, window_bounds = array<i64: 1, 128>}, {pipeline_mode = #tpu.pipeline_mode<synchronous>, transform_indices = @transform_8, window_bounds = array<i64: 128, 128>}, {pipeline_mode = #tpu.pipeline_mode<synchronous>, transform_indices = @transform_9, window_bounds = array<i64: 1, 128>}, {transform_indices = @transform_10, window_bounds = array<i64: 8, 128>}]} {
    %c0 = arith.constant 0 : index
    %0 = memref.load %arg1[%c0] : memref<1xi32, #tpu.memory_space<smem>>
    %c0_0 = arith.constant 0 : index
    %c0_1 = arith.constant 0 : index
    %1 = vector.load %arg3[%c0_0, %c0_1] : memref<64x128xbf16, #tpu.memory_space<vmem>>, vector<56x128xbf16>
    %c8 = arith.constant 8 : index
    %c0_2 = arith.constant 0 : index
    %2 = vector.load %arg3[%c8, %c0_2] : memref<64x128xbf16, #tpu.memory_space<vmem>>, vector<56x128xbf16>
    %c0_3 = arith.constant 0 : index
    %c0_4 = arith.constant 0 : index
    %3 = vector.load %arg7[%c0_3, %c0_4] : memref<128x128xbf16, #tpu.memory_space<vmem>>, vector<128x128xbf16>
    %cst = arith.constant dense<0.000000e+00> : vector<56x128xf32>
    %4 = tpu.matmul %1, %3, %cst {dimension_numbers = #tpu.dot_dimension_numbers<[1], [0], [0], [1], [0, 0, 1, 1], [], []>} : vector<56x128xbf16>, vector<128x128xbf16>, vector<56x128xf32> -> vector<56x128xf32>
    %c0_5 = arith.constant 0 : index
    %c0_6 = arith.constant 0 : index
    %5 = vector.load %arg8[%c0_5, %c0_6] : memref<128x128xbf16, #tpu.memory_space<vmem>>, vector<128x128xbf16>
    %cst_7 = arith.constant dense<0.000000e+00> : vector<56x128xf32>
    %6 = tpu.matmul %2, %5, %cst_7 {dimension_numbers = #tpu.dot_dimension_numbers<[1], [0], [0], [1], [0, 0, 1, 1], [], []>} : vector<56x128xbf16>, vector<128x128xbf16>, vector<56x128xf32> -> vector<56x128xf32>
    %7 = arith.addf %4, %6 : vector<56x128xf32>
    %c0_8 = arith.constant 0 : index
    %c0_9 = arith.constant 0 : index
    %8 = vector.load %arg9[%c0_8, %c0_9] : memref<1x128xf32, #tpu.memory_space<vmem>>, vector<1x128xf32>
    %9 = vector.broadcast %8 : vector<1x128xf32> to vector<56x128xf32>
    %10 = arith.addf %7, %9 : vector<56x128xf32>
    %11 = tpu.iota {dimensions = array<i32: 0>} : vector<56x128xi32>
    %c1_i32 = arith.constant 1 : i32
    %12 = arith.addi %0, %c1_i32 : i32
    %c8_i32 = arith.constant 8 : i32
    %13 = arith.muli %12, %c8_i32 : i32
    %14 = vector.broadcast %13 : i32 to vector<56x128xi32>
    %15 = arith.cmpi slt, %11, %14 : vector<56x128xi32>
    %cst_10 = arith.constant 0xFF800000 : f32
    %16 = vector.broadcast %cst_10 : f32 to vector<56x128xf32>
    %17 = arith.select %15, %10, %16 : vector<56x128xi1>, vector<56x128xf32>
    %18 = vector.shape_cast %17 : vector<56x128xf32> to vector<7x8x128xf32>
    %cst_11 = arith.constant dense<0xFF800000> : vector<8x128xf32>
    %19 = vector.multi_reduction <maximumf>, %18, %cst_11 [0] : vector<7x8x128xf32> to vector<8x128xf32>
    %20 = math.tanh %19 : vector<8x128xf32>
    %c0_12 = arith.constant 0 : index
    %c0_13 = arith.constant 0 : index
    %21 = vector.load %arg2[%c0_12, %c0_13] : memref<128x128xbf16, #tpu.memory_space<vmem>>, vector<120x128xbf16>
    %c8_14 = arith.constant 8 : index
    %c0_15 = arith.constant 0 : index
    %22 = vector.load %arg2[%c8_14, %c0_15] : memref<128x128xbf16, #tpu.memory_space<vmem>>, vector<120x128xbf16>
    %c0_16 = arith.constant 0 : index
    %c0_17 = arith.constant 0 : index
    %23 = vector.load %arg4[%c0_16, %c0_17] : memref<128x256xbf16, #tpu.memory_space<vmem>>, vector<128x256xbf16>
    %cst_18 = arith.constant dense<0.000000e+00> : vector<120x256xf32>
    %24 = tpu.matmul %21, %23, %cst_18 {dimension_numbers = #tpu.dot_dimension_numbers<[1], [0], [0], [1], [0, 0, 1, 1], [], []>} : vector<120x128xbf16>, vector<128x256xbf16>, vector<120x256xf32> -> vector<120x256xf32>
    %c0_19 = arith.constant 0 : index
    %c0_20 = arith.constant 0 : index
    %25 = vector.load %arg5[%c0_19, %c0_20] : memref<128x256xbf16, #tpu.memory_space<vmem>>, vector<128x256xbf16>
    %cst_21 = arith.constant dense<0.000000e+00> : vector<120x256xf32>
    %26 = tpu.matmul %22, %25, %cst_21 {dimension_numbers = #tpu.dot_dimension_numbers<[1], [0], [0], [1], [0, 0, 1, 1], [], []>} : vector<120x128xbf16>, vector<128x256xbf16>, vector<120x256xf32> -> vector<120x256xf32>
    %27 = arith.addf %24, %26 : vector<120x256xf32>
    %c0_22 = arith.constant 0 : index
    %c0_23 = arith.constant 0 : index
    %28 = vector.load %arg6[%c0_22, %c0_23] : memref<1x256xf32, #tpu.memory_space<vmem>>, vector<1x256xf32>
    %29 = vector.broadcast %28 : vector<1x256xf32> to vector<120x256xf32>
    %30 = arith.addf %27, %29 : vector<120x256xf32>
    %31 = vector.extract_strided_slice %30 {offsets = [0, 0], sizes = [120, 128], strides = [1, 1]} : vector<120x256xf32> to vector<120x128xf32>
    %32 = vector.shape_cast %31 : vector<120x128xf32> to vector<15x8x128xf32>
    %33 = vector.extract_strided_slice %30 {offsets = [0, 128], sizes = [120, 128], strides = [1, 1]} : vector<120x256xf32> to vector<120x128xf32>
    %34 = vector.shape_cast %33 : vector<120x128xf32> to vector<15x8x128xf32>
    %35 = vector.shape_cast %20 : vector<8x128xf32> to vector<1x8x128xf32>
    %36 = vector.broadcast %35 : vector<1x8x128xf32> to vector<15x8x128xf32>
    %37 = arith.addf %32, %36 : vector<15x8x128xf32>
    %cst_24 = arith.constant 0.000000e+00 : f32
    %38 = vector.broadcast %cst_24 : f32 to vector<15x8x128xf32>
    %39 = arith.maximumf %37, %38 : vector<15x8x128xf32>
    %40 = math.tanh %34 : vector<15x8x128xf32>
    %41 = arith.mulf %39, %40 : vector<15x8x128xf32>
    %cst_25 = arith.constant dense<0xFF800000> : vector<8x128xf32>
    %42 = vector.multi_reduction <maximumf>, %41, %cst_25 [0] : vector<15x8x128xf32> to vector<8x128xf32>
    %43 = arith.truncf %42 : vector<8x128xf32> to vector<8x128xbf16>
    %c0_26 = arith.constant 0 : index
    %c0_27 = arith.constant 0 : index
    %44 = vector.load %arg10[%c0_26, %c0_27] : memref<128x128xbf16, #tpu.memory_space<vmem>>, vector<128x128xbf16>
    %cst_28 = arith.constant dense<0.000000e+00> : vector<8x128xf32>
    %45 = tpu.matmul %43, %44, %cst_28 {dimension_numbers = #tpu.dot_dimension_numbers<[1], [0], [0], [1], [0, 0, 1, 1], [], []>} : vector<8x128xbf16>, vector<128x128xbf16>, vector<8x128xf32> -> vector<8x128xf32>
    %c0_29 = arith.constant 0 : index
    %c0_30 = arith.constant 0 : index
    %46 = vector.load %arg11[%c0_29, %c0_30] : memref<1x128xf32, #tpu.memory_space<vmem>>, vector<1x128xf32>
    %47 = vector.broadcast %46 : vector<1x128xf32> to vector<8x128xf32>
    %48 = arith.addf %45, %47 : vector<8x128xf32>
    %c0_31 = arith.constant 0 : index
    %c0_32 = arith.constant 0 : index
    %49 = vector.load %arg12[%c0_31, %c0_32] : memref<8x128xf32, #tpu.memory_space<vmem>>, vector<8x128xf32>
    tpu.vector_store %arg12[%c0_31, %c0_32], %48 {strides = array<i32>} : memref<8x128xf32, #tpu.memory_space<vmem>>, vector<8x128xf32>,
    return
  }
  func.func @transform_0(%arg0: i32, %arg1: memref<1xi32, #tpu.memory_space<smem>>) -> (i32, i32) {
    %c0_i32 = arith.constant 0 : i32
    %c0_i32_0 = arith.constant 0 : i32
    return %arg0, %c0_i32 : i32, i32
  }
  func.func @transform_1(%arg0: i32, %arg1: memref<1xi32, #tpu.memory_space<smem>>) -> (i32, i32) {
    %c0_i32 = arith.constant 0 : i32
    %c0_i32_0 = arith.constant 0 : i32
    return %arg0, %c0_i32 : i32, i32
  }
  func.func @transform_2(%arg0: i32, %arg1: memref<1xi32, #tpu.memory_space<smem>>) -> (i32, i32) {
    %c0_i32 = arith.constant 0 : i32
    %c0_i32_0 = arith.constant 0 : i32
    %c0_i32_1 = arith.constant 0 : i32
    return %c0_i32, %c0_i32_0 : i32, i32
  }
  func.func @transform_3(%arg0: i32, %arg1: memref<1xi32, #tpu.memory_space<smem>>) -> (i32, i32) {
    %c0_i32 = arith.constant 0 : i32
    %c0_i32_0 = arith.constant 0 : i32
    %c0_i32_1 = arith.constant 0 : i32
    return %c0_i32, %c0_i32_0 : i32, i32
  }
  func.func @transform_4(%arg0: i32, %arg1: memref<1xi32, #tpu.memory_space<smem>>) -> (i32, i32) {
    %c0_i32 = arith.constant 0 : i32
    %c0_i32_0 = arith.constant 0 : i32
    %c0_i32_1 = arith.constant 0 : i32
    return %c0_i32, %c0_i32_0 : i32, i32
  }
  func.func @transform_5(%arg0: i32, %arg1: memref<1xi32, #tpu.memory_space<smem>>) -> (i32, i32) {
    %c0_i32 = arith.constant 0 : i32
    %c0_i32_0 = arith.constant 0 : i32
    %c0_i32_1 = arith.constant 0 : i32
    return %c0_i32, %c0_i32_0 : i32, i32
  }
  func.func @transform_6(%arg0: i32, %arg1: memref<1xi32, #tpu.memory_space<smem>>) -> (i32, i32) {
    %c0_i32 = arith.constant 0 : i32
    %c0_i32_0 = arith.constant 0 : i32
    %c0_i32_1 = arith.constant 0 : i32
    return %c0_i32, %c0_i32_0 : i32, i32
  }
  func.func @transform_7(%arg0: i32, %arg1: memref<1xi32, #tpu.memory_space<smem>>) -> (i32, i32) {
    %c0_i32 = arith.constant 0 : i32
    %c0_i32_0 = arith.constant 0 : i32
    %c0_i32_1 = arith.constant 0 : i32
    return %c0_i32, %c0_i32_0 : i32, i32
  }
  func.func @transform_8(%arg0: i32, %arg1: memref<1xi32, #tpu.memory_space<smem>>) -> (i32, i32) {
    %c0_i32 = arith.constant 0 : i32
    %c0_i32_0 = arith.constant 0 : i32
    %c0_i32_1 = arith.constant 0 : i32
    return %c0_i32, %c0_i32_0 : i32, i32
  }
  func.func @transform_9(%arg0: i32, %arg1: memref<1xi32, #tpu.memory_space<smem>>) -> (i32, i32) {
    %c0_i32 = arith.constant 0 : i32
    %c0_i32_0 = arith.constant 0 : i32
    %c0_i32_1 = arith.constant 0 : i32
    return %c0_i32, %c0_i32_0 : i32, i32
  }
  func.func @transform_10(%arg0: i32, %arg1: memref<1xi32, #tpu.memory_space<smem>>) -> (i32, i32) {
    %c0_i32 = arith.constant 0 : i32
    %c0_i32_0 = arith.constant 0 : i32
    return %arg0, %c0_i32 : i32, i32
  }
}

</mosaic_0001>

<llo_original>
// kernel: tpu_custom_call.1
$region0: #{tpu_custom_call.1}
  #allocation0 [shape = 'u32[]', space=smem, size = 0x4, offset = 0x4, fixed_abs, tag = 'smem constant byte address 0x4 - core index']
  #allocation1 [shape = 'u32[144,128]{1,0:T(1,128)}', space=vmem, size = 0x12000, scoped, tag = 'internal scratch']
  #allocation2 [shape = 's32[1]{0}', space=sflag, size = 0x4, scoped, tag = 'scoped memory for tpu_custom_call.1']
  #allocation3 [shape = 's32[1]{0:T(128)S(6)}', space=smem, size = 0x200, scoped, tag = 'prefetched SMEM operand 0']
  %s0 = inlined_call_operand.<no memory space> [shape: s32[1], index: 0, kind: input, shape index: {}]
  %s1 = inlined_call_operand.hbm [shape: bf16[128,128], index: 1, kind: input, shape index: {}]
  %s2 = inlined_call_operand.hbm [shape: bf16[64,128], index: 2, kind: input, shape index: {}]
  %s3 = inlined_call_operand.hbm [shape: bf16[128,256], index: 3, kind: input, shape index: {}]
  %s4 = inlined_call_operand.hbm [shape: bf16[128,256], index: 4, kind: input, shape index: {}]
  %s5 = inlined_call_operand.vmem [shape: f32[1,256], index: 5, kind: input, shape index: {}]
  %s6 = inlined_call_operand.hbm [shape: bf16[128,128], index: 6, kind: input, shape index: {}]
  %s7 = inlined_call_operand.hbm [shape: bf16[128,128], index: 7, kind: input, shape index: {}]
  %s8 = inlined_call_operand.vmem [shape: f32[1,128], index: 8, kind: input, shape index: {}]
  %s9 = inlined_call_operand.hbm [shape: bf16[128,128], index: 9, kind: input, shape index: {}]
  %s10 = inlined_call_operand.vmem [shape: f32[1,128], index: 10, kind: input, shape index: {}]
  %s11 = inlined_call_operand.hbm [shape: f32[8,128], index: 11, kind: output, shape index: {}]
  %s12 = sld [smem:[#allocation0]]
  $region78: #{tpu_custom_call.1} parent=0
    _
  %s14 = ssub.s32 1, %s12
  %s15 = scalar_select 0, %s14, %s12
  %16 = sst [smem:[#allocation3]] %s0
  $region1: #{tpu_custom_call.1} parent=0
    #allocation4 [shape = 'u8[32768]{0}', space=vmem, size = 0x8000, scoped, tag = 'input window, operand 1, single buffered']
    #allocation5 [shape = 's32[1]{0}', space=sflag, size = 0x4, scoped, tag = 'scoped memory for tpu_custom_call.1']
    #allocation6 [shape = 's32[1]{0}', space=sflag, size = 0x4, scoped, tag = 'scoped memory for tpu_custom_call.1']
    #allocation7 [shape = 'u8[16384]{0}', space=vmem, size = 0x4000, scoped, tag = 'input window, operand 2, single buffered']
    #allocation8 [shape = 's32[1]{0}', space=sflag, size = 0x4, scoped, tag = 'scoped memory for tpu_custom_call.1']
    #allocation9 [shape = 'u8[65536]{0}', space=vmem, size = 0x10000, scoped, tag = 'input window, operand 3, single buffered']
    #allocation10 [shape = 'u8[65536]{0}', space=vmem, size = 0x10000, scoped, tag = 'input window, operand 4, single buffered']
    #allocation11 [shape = 's32[1]{0}', space=sflag, size = 0x4, scoped, tag = 'scoped memory for tpu_custom_call.1']
    #allocation12 [shape = 'u8[32768]{0}', space=vmem, size = 0x8000, scoped, tag = 'input window, operand 6, single buffered']
    #allocation13 [shape = 'u8[32768]{0}', space=vmem, size = 0x8000, scoped, tag = 'input window, operand 7, single buffered']
    #allocation14 [shape = 's32[1]{0}', space=sflag, size = 0x4, scoped, tag = 'scoped memory for tpu_custom_call.1']
    #allocation15 [shape = 'u8[32768]{0}', space=vmem, size = 0x8000, scoped, tag = 'input window, operand 9, single buffered']
    #allocation16 [shape = 'u8[4096]{0}', space=vmem, size = 0x1000, scoped, tag = 'output window, operand 0, single buffered']
    %17 = vsyncpa [#allocation5], 0
    %18 = vsyncpa [#allocation8], 0
    %19 = vsyncpa [#allocation11], 0
    %20 = vsyncpa [#allocation14], 0
    %21 = vsyncpa [#allocation6], 0
    // Predicated region
    $region2: #{tpu_custom_call.1} parent=1 // pred_check
      _
    $region3: #{tpu_custom_call.1} parent=1 // pred_check_branch
      %23 = sbr.rel (0) target = $region5
    $region4: #{tpu_custom_call.1} parent=1 // pred_region
      %s25 = ssub.s32 1024, 1024
      %26 = vsyncadd [#allocation5], %s25
      %s27 = sshll.u32 [#allocation4], 4
      %s28 = int_to_ptr.vmem [resolvable:$true] %s27
      %33 = dma.hbm_to_vmem [thread:$0]  %s1, 1024, %s28, [#allocation5], 64, 64, 4
    $region5: #{tpu_custom_call.1} parent=1 // pred_fallthru
      _
    // Predicated region
    $region6: #{tpu_custom_call.1} parent=1 // pred_check
      _
    $region7: #{tpu_custom_call.1} parent=1 // pred_check_branch
      %35 = sbr.rel (0) target = $region9
    $region8: #{tpu_custom_call.1} parent=1 // pred_region
      %s37 = ssub.s32 512, 512
      %38 = vsyncadd [#allocation8], %s37
      %s39 = sshll.u32 [#allocation7], 4
      %s40 = int_to_ptr.vmem [resolvable:$true] %s39
      %45 = dma.hbm_to_vmem [thread:$0]  %s2, 512, %s40, [#allocation8], 64, 64, 4
    $region9: #{tpu_custom_call.1} parent=1 // pred_fallthru
      _
    // Predicated region
    $region10: #{tpu_custom_call.1} parent=1 // pred_check
      _
    $region11: #{tpu_custom_call.1} parent=1 // pred_check_branch
      %47 = sbr.rel (0) target = $region13
    $region12: #{tpu_custom_call.1} parent=1 // pred_region
      %s49 = ssub.s32 2048, 2048
      %50 = vsyncadd [#allocation8], %s49
      %s51 = sshll.u32 [#allocation9], 4
      %s52 = int_to_ptr.vmem [resolvable:$true] %s51
      %57 = dma.hbm_to_vmem [thread:$0]  %s3, 2048, %s52, [#allocation8], 128, 128, 8
    $region13: #{tpu_custom_call.1} parent=1 // pred_fallthru
      _
    // Predicated region
    $region14: #{tpu_custom_call.1} parent=1 // pred_check
      _
    $region15: #{tpu_custom_call.1} parent=1 // pred_check_branch
      %59 = sbr.rel (0) target = $region17
    $region16: #{tpu_custom_call.1} parent=1 // pred_region
      %s61 = ssub.s32 2048, 2048
      %62 = vsyncadd [#allocation11], %s61
      %s63 = sshll.u32 [#allocation10], 4
      %s64 = int_to_ptr.vmem [resolvable:$true] %s63
      %69 = dma.hbm_to_vmem [thread:$0]  %s4, 2048, %s64, [#allocation11], 128, 128, 8
    $region17: #{tpu_custom_call.1} parent=1 // pred_fallthru
      _
    // Predicated region
    $region18: #{tpu_custom_call.1} parent=1 // pred_check
      _
    $region19: #{tpu_custom_call.1} parent=1 // pred_check_branch
      %71 = sbr.rel (0) target = $region21
    $region20: #{tpu_custom_call.1} parent=1 // pred_region
      _
    $region21: #{tpu_custom_call.1} parent=1 // pred_fallthru
      _
    // Predicated region
    $region22: #{tpu_custom_call.1} parent=1 // pred_check
      _
    $region23: #{tpu_custom_call.1} parent=1 // pred_check_branch
      %73 = sbr.rel (0) target = $region25
    $region24: #{tpu_custom_call.1} parent=1 // pred_region
      %s75 = ssub.s32 1024, 1024
      %76 = vsyncadd [#allocation11], %s75
      %s77 = sshll.u32 [#allocation12], 4
      %s78 = int_to_ptr.vmem [resolvable:$true] %s77
      %83 = dma.hbm_to_vmem [thread:$0]  %s6, 1024, %s78, [#allocation11], 64, 64, 4
    $region25: #{tpu_custom_call.1} parent=1 // pred_fallthru
      _
    // Predicated region
    $region26: #{tpu_custom_call.1} parent=1 // pred_check
      _
    $region27: #{tpu_custom_call.1} parent=1 // pred_check_branch
      %85 = sbr.rel (0) target = $region29
    $region28: #{tpu_custom_call.1} parent=1 // pred_region
      %s87 = ssub.s32 1024, 1024
      %88 = vsyncadd [#allocation14], %s87
      %s89 = sshll.u32 [#allocation13], 4
      %s90 = int_to_ptr.vmem [resolvable:$true] %s89
      %95 = dma.hbm_to_vmem [thread:$0]  %s7, 1024, %s90, [#allocation14], 64, 64, 4
    $region29: #{tpu_custom_call.1} parent=1 // pred_fallthru
      _
    // Predicated region
    $region30: #{tpu_custom_call.1} parent=1 // pred_check
      _
    $region31: #{tpu_custom_call.1} parent=1 // pred_check_branch
      %97 = sbr.rel (0) target = $region33
    $region32: #{tpu_custom_call.1} parent=1 // pred_region
      _
    $region33: #{tpu_custom_call.1} parent=1 // pred_fallthru
      _
    // Predicated region
    $region34: #{tpu_custom_call.1} parent=1 // pred_check
      _
    $region35: #{tpu_custom_call.1} parent=1 // pred_check_branch
      %99 = sbr.rel (0) target = $region37
    $region36: #{tpu_custom_call.1} parent=1 // pred_region
      %s101 = ssub.s32 1024, 1024
      %102 = vsyncadd [#allocation14], %s101
      %s103 = sshll.u32 [#allocation15], 4
      %s104 = int_to_ptr.vmem [resolvable:$true] %s103
      %109 = dma.hbm_to_vmem [thread:$0]  %s9, 1024, %s104, [#allocation14], 64, 64, 4
    $region37: #{tpu_custom_call.1} parent=1 // pred_fallthru
      _
    // Predicated region
    $region38: #{tpu_custom_call.1} parent=1 // pred_check
      _
    $region39: #{tpu_custom_call.1} parent=1 // pred_check_branch
      %111 = sbr.rel (0) target = $region41
    $region40: #{tpu_custom_call.1} parent=1 // pred_region
      _
    $region41: #{tpu_custom_call.1} parent=1 // pred_fallthru
      _
    // Predicated region
    $region42: #{tpu_custom_call.1} parent=1 // pred_check
      _
    $region43: #{tpu_custom_call.1} parent=1 // pred_check_branch
      %113 = sbr.rel (0) target = $region45
    $region44: #{tpu_custom_call.1} parent=1 // pred_region
      %114 = dma.done [#allocation5], 1024
    $region45: #{tpu_custom_call.1} parent=1 // pred_fallthru
      _
    // Predicated region
    $region46: #{tpu_custom_call.1} parent=1 // pred_check
      _
    $region47: #{tpu_custom_call.1} parent=1 // pred_check_branch
      %116 = sbr.rel (0) target = $region49
    $region48: #{tpu_custom_call.1} parent=1 // pred_region
      %117 = dma.done [#allocation8], 512
    $region49: #{tpu_custom_call.1} parent=1 // pred_fallthru
      _
    // Predicated region
    $region50: #{tpu_custom_call.1} parent=1 // pred_check
      _
    $region51: #{tpu_custom_call.1} parent=1 // pred_check_branch
      %119 = sbr.rel (0) target = $region53
    $region52: #{tpu_custom_call.1} parent=1 // pred_region
      %120 = dma.done [#allocation8], 2048
    $region53: #{tpu_custom_call.1} parent=1 // pred_fallthru
      _
    // Predicated region
    $region54: #{tpu_custom_call.1} parent=1 // pred_check
      _
    $region55: #{tpu_custom_call.1} parent=1 // pred_check_branch
      %122 = sbr.rel (0) target = $region57
    $region56: #{tpu_custom_call.1} parent=1 // pred_region
      %123 = dma.done [#allocation11], 2048
    $region57: #{tpu_custom_call.1} parent=1 // pred_fallthru
      _
    // Predicated region
    $region58: #{tpu_custom_call.1} parent=1 // pred_check
      _
    $region59: #{tpu_custom_call.1} parent=1 // pred_check_branch
      %125 = sbr.rel (0) target = $region61
    $region60: #{tpu_custom_call.1} parent=1 // pred_region
      %126 = dma.done [#allocation11], 1024
    $region61: #{tpu_custom_call.1} parent=1 // pred_fallthru
      _
    // Predicated region
    $region62: #{tpu_custom_call.1} parent=1 // pred_check
      _
    $region63: #{tpu_custom_call.1} parent=1 // pred_check_branch
      %128 = sbr.rel (0) target = $region65
    $region64: #{tpu_custom_call.1} parent=1 // pred_region
      %129 = dma.done [#allocation14], 1024
    $region65: #{tpu_custom_call.1} parent=1 // pred_fallthru
      _
    // Predicated region
    $region66: #{tpu_custom_call.1} parent=1 // pred_check
      _
    $region67: #{tpu_custom_call.1} parent=1 // pred_check_branch
      %131 = sbr.rel (0) target = $region69
    $region68: #{tpu_custom_call.1} parent=1 // pred_region
      %132 = dma.done [#allocation14], 1024
    $region69: #{tpu_custom_call.1} parent=1 // pred_fallthru
      _
    %s134 = sld [smem:[#allocation3]]
    %v135 = vld [vmem:[#allocation7] sm:$0xf]
    %v136 = vld [vmem:[#allocation7 + $0x4] sm:$0xf]
    %v137 = vld [vmem:[#allocation7 + $0x8] sm:$0xf]
    %v138 = vld [vmem:[#allocation7 + $0xc] sm:$0xf]
    %v139 = vld [vmem:[#allocation7 + $0x10] sm:$0xf]
    %v140 = vld [vmem:[#allocation7 + $0x14] sm:$0xf]
    %v141 = vld [vmem:[#allocation7 + $0x18] sm:$0xf]
    %v142 = vld [vmem:[#allocation7 + $0x4] sm:$0xf]
    %v143 = vld [vmem:[#allocation7 + $0x8] sm:$0xf]
    %v144 = vld [vmem:[#allocation7 + $0xc] sm:$0xf]
    %v145 = vld [vmem:[#allocation7 + $0x10] sm:$0xf]
    %v146 = vld [vmem:[#allocation7 + $0x14] sm:$0xf]
    %v147 = vld [vmem:[#allocation7 + $0x18] sm:$0xf]
    %v148 = vld [vmem:[#allocation7 + $0x1c] sm:$0xf]
    %v149 = vld [vmem:[#allocation12] sm:$0xf]
    %v150 = vld [vmem:[#allocation12 + $0x4] sm:$0xf]
    %v151 = vld [vmem:[#allocation12 + $0x8] sm:$0xf]
    %v152 = vld [vmem:[#allocation12 + $0xc] sm:$0xf]
    %v153 = vld [vmem:[#allocation12 + $0x10] sm:$0xf]
    %v154 = vld [vmem:[#allocation12 + $0x14] sm:$0xf]
    %v155 = vld [vmem:[#allocation12 + $0x18] sm:$0xf]
    %v156 = vld [vmem:[#allocation12 + $0x1c] sm:$0xf]
    %v157 = vld [vmem:[#allocation12 + $0x20] sm:$0xf]
    %v158 = vld [vmem:[#allocation12 + $0x24] sm:$0xf]
    %v159 = vld [vmem:[#allocation12 + $0x28] sm:$0xf]
    %v160 = vld [vmem:[#allocation12 + $0x2c] sm:$0xf]
    %v161 = vld [vmem:[#allocation12 + $0x30] sm:$0xf]
    %v162 = vld [vmem:[#allocation12 + $0x34] sm:$0xf]
    %v163 = vld [vmem:[#allocation12 + $0x38] sm:$0xf]
    %v164 = vld [vmem:[#allocation12 + $0x3c] sm:$0xf]
    %v165 = vld [vmem:[#allocation13] sm:$0xf]
    %v166 = vld [vmem:[#allocation13 + $0x4] sm:$0xf]
    %v167 = vld [vmem:[#allocation13 + $0x8] sm:$0xf]
    %v168 = vld [vmem:[#allocation13 + $0xc] sm:$0xf]
    %v169 = vld [vmem:[#allocation13 + $0x10] sm:$0xf]
    %v170 = vld [vmem:[#allocation13 + $0x14] sm:$0xf]
    %v171 = vld [vmem:[#allocation13 + $0x18] sm:$0xf]
    %v172 = vld [vmem:[#allocation13 + $0x1c] sm:$0xf]
    %v173 = vld [vmem:[#allocation13 + $0x20] sm:$0xf]
    %v174 = vld [vmem:[#allocation13 + $0x24] sm:$0xf]
    %v175 = vld [vmem:[#allocation13 + $0x28] sm:$0xf]
    %v176 = vld [vmem:[#allocation13 + $0x2c] sm:$0xf]
    %v177 = vld [vmem:[#allocation13 + $0x30] sm:$0xf]
    %v178 = vld [vmem:[#allocation13 + $0x34] sm:$0xf]
    %v179 = vld [vmem:[#allocation13 + $0x38] sm:$0xf]
    %v180 = vld [vmem:[#allocation13 + $0x3c] sm:$0xf]
    %v188 = vunpack.c.l.b16 %v142
    %v189 = vunpack.c.l.b16 %v143
    %v190 = vunpack.c.l.b16 %v144
    %v191 = vunpack.c.l.b16 %v145
    %v192 = vunpack.c.l.b16 %v146
    %v193 = vunpack.c.l.b16 %v147
    %v194 = vunpack.c.l.b16 %v148
    %v195 = vpack.c.b16 %v189, %v188
    %v196 = vpack.c.b16 %v191, %v190
    %v197 = vpack.c.b16 %v193, %v192
    %v198 = vpack.c.b16 %v194, %v194
    %v219 = vunpack.c.l.b16 %v165
    %v220 = vunpack.c.l.b16 %v166
    %v221 = vunpack.c.l.b16 %v167
    %v222 = vunpack.c.l.b16 %v168
    %v223 = vunpack.c.l.b16 %v169
    %v224 = vunpack.c.l.b16 %v170
    %v225 = vunpack.c.l.b16 %v171
    %v226 = vunpack.c.l.b16 %v172
    %v227 = vunpack.c.l.b16 %v173
    %v228 = vunpack.c.l.b16 %v174
    %v229 = vunpack.c.l.b16 %v175
    %v230 = vunpack.c.l.b16 %v176
    %v231 = vunpack.c.l.b16 %v177
    %v232 = vunpack.c.l.b16 %v178
    %v233 = vunpack.c.l.b16 %v179
    %v234 = vunpack.c.l.b16 %v180
    %v235 = vpack.c.b16 %v220, %v219
    %v236 = vpack.c.b16 %v222, %v221
    %v237 = vpack.c.b16 %v224, %v223
    %v238 = vpack.c.b16 %v226, %v225
    %v239 = vpack.c.b16 %v228, %v227
    %v240 = vpack.c.b16 %v230, %v229
    %v241 = vpack.c.b16 %v232, %v231
    %v242 = vpack.c.b16 %v234, %v233
    %251 = vmatprep.subr.bf16.mxu0 0
    %252 = vmatpush1.bf16.msra.mxu0 %v242
    %253 = vmatprep.subr.bf16.mxu0 0
    %254 = vmatpush1.bf16.msra.mxu0 %v241
    %255 = vmatprep.subr.bf16.mxu0 0
    %256 = vmatpush1.bf16.msra.mxu0 %v240
    %257 = vmatprep.subr.bf16.mxu0 0
    %258 = vmatpush1.bf16.msra.mxu0 %v239
    %259 = vmatprep.subr.bf16.mxu0 0
    %260 = vmatpush1.bf16.msra.mxu0 %v238
    %261 = vmatprep.subr.bf16.mxu0 0
    %262 = vmatpush1.bf16.msra.mxu0 %v237
    %263 = vmatprep.subr.bf16.mxu0 0
    %264 = vmatpush1.bf16.msra.mxu0 %v236
    %265 = vmatprep.subr.bf16.mxu0 0
    %266 = vmatpush1.bf16.msra.mxu0 %v235
    %267 = vmatprep.subr.bf16.mxu0 0
    %268 = vmatpush2.bf16.msra.mxu0 0
    %269 = vmatprep.subr.bf16.mxu0 0
    %270 = vmatpush2.bf16.msra.mxu0 0
    %271 = vmatprep.subr.bf16.mxu0 0
    %272 = vmatpush2.bf16.msra.mxu0 0
    %273 = vmatprep.subr.bf16.mxu0 0
    %274 = vmatpush2.bf16.msra.mxu0 0
    %275 = vmatprep.subr.bf16.mxu0 0
    %276 = vmatpush2.bf16.msra.mxu0 0
    %277 = vmatprep.subr.bf16.mxu0 0
    %278 = vmatpush2.bf16.msra.mxu0 0
    %279 = vmatprep.subr.bf16.mxu0 0
    %280 = vmatpush2.bf16.msra.mxu0 0
    %281 = vmatprep.subr.bf16.mxu0 0
    %282 = vmatpush2.bf16.msra.mxu0 0
    %283 = vmatprep.mubr.bf16.mxu0 0
    %284 = vmatmul.mubr.bf16.gmra.mxu0 %v195
    %v285 = vpop.f32.mrf.mxu0
    %v286 = vadd.f32 0.0, %v285
    %v287 = vpop.f32.mrf.mxu0
    %v288 = vpop.f32.mrf.mxu0
    %v289 = vadd.f32 0.0, %v288
    %v290 = vpop.f32.mrf.mxu0
    %291 = vmatprep.mubr.bf16.mxu0 0
    %292 = vmatmul.mubr.bf16.gmra.mxu0 %v196
    %v293 = vpop.f32.mrf.mxu0
    %v294 = vadd.f32 0.0, %v293
    %v295 = vpop.f32.mrf.mxu0
    %v296 = vpop.f32.mrf.mxu0
    %v297 = vadd.f32 0.0, %v296
    %v298 = vpop.f32.mrf.mxu0
    %299 = vmatprep.mubr.bf16.mxu0 0
    %300 = vmatmul.mubr.bf16.gmra.mxu0 %v197
    %v301 = vpop.f32.mrf.mxu0
    %v302 = vadd.f32 0.0, %v301
    %v303 = vpop.f32.mrf.mxu0
    %v304 = vpop.f32.mrf.mxu0
    %v305 = vadd.f32 0.0, %v304
    %v306 = vpop.f32.mrf.mxu0
    %307 = vmatprep.mubr.bf16.mxu0 0
    %308 = vmatmul.mubr.bf16.gmra.mxu0 %v198
    %v309 = vpop.f32.mrf.mxu0
    %v310 = vadd.f32 0.0, %v309
    %v311 = vpop.f32.mrf.mxu0
    %v312 = vpop.f32.mrf.mxu0
    %v313 = vpop.f32.mrf.mxu0
    %314 = vdwg.mxu0
    %v322 = vunpack.c.l.b16 %v135
    %v323 = vunpack.c.l.b16 %v136
    %v324 = vunpack.c.l.b16 %v137
    %v325 = vunpack.c.l.b16 %v138
    %v326 = vunpack.c.l.b16 %v139
    %v327 = vunpack.c.l.b16 %v140
    %v328 = vunpack.c.l.b16 %v141
    %v329 = vpack.c.b16 %v323, %v322
    %v330 = vpack.c.b16 %v325, %v324
    %v331 = vpack.c.b16 %v327, %v326
    %v332 = vpack.c.b16 %v328, %v328
    %v353 = vunpack.c.l.b16 %v149
    %v354 = vunpack.c.l.b16 %v150
    %v355 = vunpack.c.l.b16 %v151
    %v356 = vunpack.c.l.b16 %v152
    %v357 = vunpack.c.l.b16 %v153
    %v358 = vunpack.c.l.b16 %v154
    %v359 = vunpack.c.l.b16 %v155
    %v360 = vunpack.c.l.b16 %v156
    %v361 = vunpack.c.l.b16 %v157
    %v362 = vunpack.c.l.b16 %v158
    %v363 = vunpack.c.l.b16 %v159
    %v364 = vunpack.c.l.b16 %v160
    %v365 = vunpack.c.l.b16 %v161
    %v366 = vunpack.c.l.b16 %v162
    %v367 = vunpack.c.l.b16 %v163
    %v368 = vunpack.c.l.b16 %v164
    %v369 = vpack.c.b16 %v354, %v353
    %v370 = vpack.c.b16 %v356, %v355
    %v371 = vpack.c.b16 %v358, %v357
    %v372 = vpack.c.b16 %v360, %v359
    %v373 = vpack.c.b16 %v362, %v361
    %v374 = vpack.c.b16 %v364, %v363
    %v375 = vpack.c.b16 %v366, %v365
    %v376 = vpack.c.b16 %v368, %v367
    %385 = vmatprep.subr.bf16.mxu0 0
    %386 = vmatpush1.bf16.msra.mxu0 %v376
    %387 = vmatprep.subr.bf16.mxu0 0
    %388 = vmatpush1.bf16.msra.mxu0 %v375
    %389 = vmatprep.subr.bf16.mxu0 0
    %390 = vmatpush1.bf16.msra.mxu0 %v374
    %391 = vmatprep.subr.bf16.mxu0 0
    %392 = vmatpush1.bf16.msra.mxu0 %v373
    %393 = vmatprep.subr.bf16.mxu0 0
    %394 = vmatpush1.bf16.msra.mxu0 %v372
    %395 = vmatprep.subr.bf16.mxu0 0
    %396 = vmatpush1.bf16.msra.mxu0 %v371
    %397 = vmatprep.subr.bf16.mxu0 0
    %398 = vmatpush1.bf16.msra.mxu0 %v370
    %399 = vmatprep.subr.bf16.mxu0 0
    %400 = vmatpush1.bf16.msra.mxu0 %v369
    %401 = vmatprep.subr.bf16.mxu0 0
    %402 = vmatpush2.bf16.msra.mxu0 0
    %403 = vmatprep.subr.bf16.mxu0 0
    %404 = vmatpush2.bf16.msra.mxu0 0
    %405 = vmatprep.subr.bf16.mxu0 0
    %406 = vmatpush2.bf16.msra.mxu0 0
    %407 = vmatprep.subr.bf16.mxu0 0
    %408 = vmatpush2.bf16.msra.mxu0 0
    %409 = vmatprep.subr.bf16.mxu0 0
    %410 = vmatpush2.bf16.msra.mxu0 0
    %411 = vmatprep.subr.bf16.mxu0 0
    %412 = vmatpush2.bf16.msra.mxu0 0
    %413 = vmatprep.subr.bf16.mxu0 0
    %414 = vmatpush2.bf16.msra.mxu0 0
    %415 = vmatprep.subr.bf16.mxu0 0
    %416 = vmatpush2.bf16.msra.mxu0 0
    %417 = vmatprep.mubr.bf16.mxu0 0
    %418 = vmatmul.mubr.bf16.gmra.mxu0 %v329
    %v419 = vpop.f32.mrf.mxu0
    %v420 = vadd.f32 %v286, %v419
    %v421 = vpop.f32.mrf.mxu0
    %v422 = vpop.f32.mrf.mxu0
    %v423 = vadd.f32 %v289, %v422
    %v424 = vpop.f32.mrf.mxu0
    %425 = vmatprep.mubr.bf16.mxu0 0
    %426 = vmatmul.mubr.bf16.gmra.mxu0 %v330
    %v427 = vpop.f32.mrf.mxu0
    %v428 = vadd.f32 %v294, %v427
    %v429 = vpop.f32.mrf.mxu0
    %v430 = vpop.f32.mrf.mxu0
    %v431 = vadd.f32 %v297, %v430
    %v432 = vpop.f32.mrf.mxu0
    %433 = vmatprep.mubr.bf16.mxu0 0
    %434 = vmatmul.mubr.bf16.gmra.mxu0 %v331
    %v435 = vpop.f32.mrf.mxu0
    %v436 = vadd.f32 %v302, %v435
    %v437 = vpop.f32.mrf.mxu0
    %v438 = vpop.f32.mrf.mxu0
    %v439 = vadd.f32 %v305, %v438
    %v440 = vpop.f32.mrf.mxu0
    %441 = vmatprep.mubr.bf16.mxu0 0
    %442 = vmatmul.mubr.bf16.gmra.mxu0 %v332
    %v443 = vpop.f32.mrf.mxu0
    %v444 = vadd.f32 %v310, %v443
    %v445 = vpop.f32.mrf.mxu0
    %v446 = vpop.f32.mrf.mxu0
    %v447 = vpop.f32.mrf.mxu0
    %448 = vdwg.mxu0
    %v449 = vld [vmem:[%s8] sm:$0x1]
    %v451 = vlaneseq
    %v452 = vshrl.u32 %v451, 7
    %v453 = vsub.s32 0, %v452
    %v454 = vrot.slane %v449, %v453
    %v456 = vadd.f32 %v420, %v454
    %v457 = vadd.f32 %v423, %v454
    %v458 = vadd.f32 %v428, %v454
    %v459 = vadd.f32 %v431, %v454
    %v460 = vadd.f32 %v436, %v454
    %v461 = vadd.f32 %v439, %v454
    %v462 = vadd.f32 %v444, %v454
    %v463 = vlaneseq
    %v464 = vshrl.u32 %v463, 7
    %v465 = vadd.s32 %v464, 8
    %v466 = vadd.s32 %v464, 16
    %v467 = vadd.s32 %v464, 24
    %v468 = vadd.s32 %v464, 32
    %v469 = vadd.s32 %v464, 40
    %v470 = vadd.s32 %v464, 48
    %s471 = sadd.s32 %s134, 1
    %s472 = smul.u32 %s471, 8
    %v473 = vstv %s472
    %vm474 = vcmp.lt.s32.totalorder %v464, %v473
    %vm475 = vcmp.lt.s32.totalorder %v465, %v473
    %vm476 = vcmp.lt.s32.totalorder %v466, %v473
    %vm477 = vcmp.lt.s32.totalorder %v467, %v473
    %vm478 = vcmp.lt.s32.totalorder %v468, %v473
    %vm479 = vcmp.lt.s32.totalorder %v469, %v473
    %vm480 = vcmp.lt.s32.totalorder %v470, %v473
    %v481 = vsel %vm474, %v456, -inf
    %v482 = vsel %vm475, %v457, -inf
    %v483 = vsel %vm476, %v458, -inf
    %v484 = vsel %vm477, %v459, -inf
    %v485 = vsel %vm478, %v460, -inf
    %v486 = vsel %vm479, %v461, -inf
    %v487 = vsel %vm480, %v462, -inf
    %v488 = vmax.f32 %v481, %v485
    %v489 = vmax.f32 %v482, %v486
    %v490 = vmax.f32 %v483, %v487
    %v491 = vmax.f32 %v488, %v489
    %v492 = vmax.f32 %v490, %v484
    %v493 = vmax.f32 %v491, %v492
    %v494 = vtanh.pop %v493
    %v495 = vld [vmem:[#allocation4] sm:$0xf]
    %v496 = vld [vmem:[#allocation4 + $0x4] sm:$0xf]
    %v497 = vld [vmem:[#allocation4 + $0x8] sm:$0xf]
    %v498 = vld [vmem:[#allocation4 + $0xc] sm:$0xf]
    %v499 = vld [vmem:[#allocation4 + $0x10] sm:$0xf]
    %v500 = vld [vmem:[#allocation4 + $0x14] sm:$0xf]
    %v501 = vld [vmem:[#allocation4 + $0x18] sm:$0xf]
    %v502 = vld [vmem:[#allocation4 + $0x1c] sm:$0xf]
    %v503 = vld [vmem:[#allocation4 + $0x20] sm:$0xf]
    %v504 = vld [vmem:[#allocation4 + $0x24] sm:$0xf]
    %v505 = vld [vmem:[#allocation4 + $0x28] sm:$0xf]
    %v506 = vld [vmem:[#allocation4 + $0x2c] sm:$0xf]
    %v507 = vld [vmem:[#allocation4 + $0x30] sm:$0xf]
    %v508 = vld [vmem:[#allocation4 + $0x34] sm:$0xf]
    %v509 = vld [vmem:[#allocation4 + $0x38] sm:$0xf]
    %v510 = vld [vmem:[#allocation4 + $0x4] sm:$0xf]
    %v511 = vld [vmem:[#allocation4 + $0x8] sm:$0xf]
    %v512 = vld [vmem:[#allocation4 + $0xc] sm:$0xf]
    %v513 = vld [vmem:[#allocation4 + $0x10] sm:$0xf]
    %v514 = vld [vmem:[#allocation4 + $0x14] sm:$0xf]
    %v515 = vld [vmem:[#allocation4 + $0x18] sm:$0xf]
    %v516 = vld [vmem:[#allocation4 + $0x1c] sm:$0xf]
    %v517 = vld [vmem:[#allocation4 + $0x20] sm:$0xf]
    %v518 = vld [vmem:[#allocation4 + $0x24] sm:$0xf]
    %v519 = vld [vmem:[#allocation4 + $0x28] sm:$0xf]
    %v520 = vld [vmem:[#allocation4 + $0x2c] sm:$0xf]
    %v521 = vld [vmem:[#allocation4 + $0x30] sm:$0xf]
    %v522 = vld [vmem:[#allocation4 + $0x34] sm:$0xf]
    %v523 = vld [vmem:[#allocation4 + $0x38] sm:$0xf]
    %v524 = vld [vmem:[#allocation4 + $0x3c] sm:$0xf]
    %v525 = vld [vmem:[#allocation9] sm:$0xff]
    %v526 = vld [vmem:[#allocation9 + $0x8] sm:$0xff]
    %v527 = vld [vmem:[#allocation9 + $0x10] sm:$0xff]
    %v528 = vld [vmem:[#allocation9 + $0x18] sm:$0xff]
    %v529 = vld [vmem:[#allocation9 + $0x20] sm:$0xff]
    %v530 = vld [vmem:[#allocation9 + $0x28] sm:$0xff]
    %v531 = vld [vmem:[#allocation9 + $0x30] sm:$0xff]
    %v532 = vld [vmem:[#allocation9 + $0x38] sm:$0xff]
    %v533 = vld [vmem:[#allocation9 + $0x40] sm:$0xff]
    %v534 = vld [vmem:[#allocation9 + $0x48] sm:$0xff]
    %v535 = vld [vmem:[#allocation9 + $0x50] sm:$0xff]
    %v536 = vld [vmem:[#allocation9 + $0x58] sm:$0xff]
    %v537 = vld [vmem:[#allocation9 + $0x60] sm:$0xff]
    %v538 = vld [vmem:[#allocation9 + $0x68] sm:$0xff]
    %v539 = vld [vmem:[#allocation9 + $0x70] sm:$0xff]
    %v540 = vld [vmem:[#allocation9 + $0x78] sm:$0xff]
    %v541 = vld [vmem:[#allocation10] sm:$0xff]
    %v542 = vld [vmem:[#allocation10 + $0x8] sm:$0xff]
    %v543 = vld [vmem:[#allocation10 + $0x10] sm:$0xff]
    %v544 = vld [vmem:[#allocation10 + $0x18] sm:$0xff]
    %v545 = vld [vmem:[#allocation10 + $0x20] sm:$0xff]
    %v546 = vld [vmem:[#allocation10 + $0x28] sm:$0xff]
    %v547 = vld [vmem:[#allocation10 + $0x30] sm:$0xff]
    %v548 = vld [vmem:[#allocation10 + $0x38] sm:$0xff]
    %v549 = vld [vmem:[#allocation10 + $0x40] sm:$0xff]
    %v550 = vld [vmem:[#allocation10 + $0x48] sm:$0xff]
    %v551 = vld [vmem:[#allocation10 + $0x50] sm:$0xff]
    %v552 = vld [vmem:[#allocation10 + $0x58] sm:$0xff]
    %v553 = vld [vmem:[#allocation10 + $0x60] sm:$0xff]
    %v554 = vld [vmem:[#allocation10 + $0x68] sm:$0xff]
    %v555 = vld [vmem:[#allocation10 + $0x70] sm:$0xff]
    %v556 = vld [vmem:[#allocation10 + $0x78] sm:$0xff]
    %v572 = vunpack.c.l.b16 %v510
    %v573 = vunpack.c.l.b16 %v511
    %v574 = vunpack.c.l.b16 %v512
    %v575 = vunpack.c.l.b16 %v513
    %v576 = vunpack.c.l.b16 %v514
    %v577 = vunpack.c.l.b16 %v515
    %v578 = vunpack.c.l.b16 %v516
    %v579 = vunpack.c.l.b16 %v517
    %v580 = vunpack.c.l.b16 %v518
    %v581 = vunpack.c.l.b16 %v519
    %v582 = vunpack.c.l.b16 %v520
    %v583 = vunpack.c.l.b16 %v521
    %v584 = vunpack.c.l.b16 %v522
    %v585 = vunpack.c.l.b16 %v523
    %v586 = vunpack.c.l.b16 %v524
    %v587 = vpack.c.b16 %v573, %v572
    %v588 = vpack.c.b16 %v575, %v574
    %v589 = vpack.c.b16 %v577, %v576
    %v590 = vpack.c.b16 %v579, %v578
    %v591 = vpack.c.b16 %v581, %v580
    %v592 = vpack.c.b16 %v583, %v582
    %v593 = vpack.c.b16 %v585, %v584
    %v594 = vpack.c.b16 %v586, %v586
    %v619 = vunpack.c.l.b16 %v541
    %v620 = vunpack.c.h.b16 %v541
    %v621 = vunpack.c.l.b16 %v542
    %v622 = vunpack.c.h.b16 %v542
    %v623 = vunpack.c.l.b16 %v543
    %v624 = vunpack.c.h.b16 %v543
    %v625 = vunpack.c.l.b16 %v544
    %v626 = vunpack.c.h.b16 %v544
    %v627 = vunpack.c.l.b16 %v545
    %v628 = vunpack.c.h.b16 %v545
    %v629 = vunpack.c.l.b16 %v546
    %v630 = vunpack.c.h.b16 %v546
    %v631 = vunpack.c.l.b16 %v547
    %v632 = vunpack.c.h.b16 %v547
    %v633 = vunpack.c.l.b16 %v548
    %v634 = vunpack.c.h.b16 %v548
    %v635 = vunpack.c.l.b16 %v549
    %v636 = vunpack.c.h.b16 %v549
    %v637 = vunpack.c.l.b16 %v550
    %v638 = vunpack.c.h.b16 %v550
    %v639 = vunpack.c.l.b16 %v551
    %v640 = vunpack.c.h.b16 %v551
    %v641 = vunpack.c.l.b16 %v552
    %v642 = vunpack.c.h.b16 %v552
    %v643 = vunpack.c.l.b16 %v553
    %v644 = vunpack.c.h.b16 %v553
    %v645 = vunpack.c.l.b16 %v554
    %v646 = vunpack.c.h.b16 %v554
    %v647 = vunpack.c.l.b16 %v555
    %v648 = vunpack.c.h.b16 %v555
    %v649 = vunpack.c.l.b16 %v556
    %v650 = vunpack.c.h.b16 %v556
    %v651 = vpack.c.b16 %v621, %v619
    %v652 = vpack.c.b16 %v622, %v620
    %v653 = vpack.c.b16 %v625, %v623
    %v654 = vpack.c.b16 %v626, %v624
    %v655 = vpack.c.b16 %v629, %v627
    %v656 = vpack.c.b16 %v630, %v628
    %v657 = vpack.c.b16 %v633, %v631
    %v658 = vpack.c.b16 %v634, %v632
    %v659 = vpack.c.b16 %v637, %v635
    %v660 = vpack.c.b16 %v638, %v636
    %v661 = vpack.c.b16 %v641, %v639
    %v662 = vpack.c.b16 %v642, %v640
    %v663 = vpack.c.b16 %v645, %v643
    %v664 = vpack.c.b16 %v646, %v644
    %v665 = vpack.c.b16 %v649, %v647
    %v666 = vpack.c.b16 %v650, %v648
    %683 = vmatprep.subr.bf16.mxu0 %v666
    %684 = vmatpush1.bf16.msra.mxu0 %v665
    %685 = vmatprep.subr.bf16.mxu0 %v664
    %686 = vmatpush1.bf16.msra.mxu0 %v663
    %687 = vmatprep.subr.bf16.mxu0 %v662
    %688 = vmatpush1.bf16.msra.mxu0 %v661
    %689 = vmatprep.subr.bf16.mxu0 %v660
    %690 = vmatpush1.bf16.msra.mxu0 %v659
    %691 = vmatprep.subr.bf16.mxu0 %v658
    %692 = vmatpush1.bf16.msra.mxu0 %v657
    %693 = vmatprep.subr.bf16.mxu0 %v656
    %694 = vmatpush1.bf16.msra.mxu0 %v655
    %695 = vmatprep.subr.bf16.mxu0 %v654
    %696 = vmatpush1.bf16.msra.mxu0 %v653
    %697 = vmatprep.subr.bf16.mxu0 %v652
    %698 = vmatpush1.bf16.msra.mxu0 %v651
    %699 = vmatprep.subr.bf16.mxu0 0
    %700 = vmatpush2.bf16.msra.mxu0 0
    %701 = vmatprep.subr.bf16.mxu0 0
    %702 = vmatpush2.bf16.msra.mxu0 0
    %703 = vmatprep.subr.bf16.mxu0 0
    %704 = vmatpush2.bf16.msra.mxu0 0
    %705 = vmatprep.subr.bf16.mxu0 0
    %706 = vmatpush2.bf16.msra.mxu0 0
    %707 = vmatprep.subr.bf16.mxu0 0
    %708 = vmatpush2.bf16.msra.mxu0 0
    %709 = vmatprep.subr.bf16.mxu0 0
    %710 = vmatpush2.bf16.msra.mxu0 0
    %711 = vmatprep.subr.bf16.mxu0 0
    %712 = vmatpush2.bf16.msra.mxu0 0
    %713 = vmatprep.subr.bf16.mxu0 0
    %714 = vmatpush2.bf16.msra.mxu0 0
    %715 = vmatprep.mubr.bf16.mxu0 0
    %716 = vmatmul.mubr.bf16.gmra.mxu0 %v587
    %v717 = vpop.f32.mrf.mxu0
    %v718 = vadd.f32 0.0, %v717
    %v719 = vpop.f32.mrf.mxu0
    %v720 = vadd.f32 0.0, %v719
    %v721 = vpop.f32.mrf.mxu0
    %v722 = vadd.f32 0.0, %v721
    %v723 = vpop.f32.mrf.mxu0
    %v724 = vadd.f32 0.0, %v723
    %725 = vmatprep.mubr.bf16.mxu0 0
    %726 = vmatmul.mubr.bf16.gmra.mxu0 %v588
    %v727 = vpop.f32.mrf.mxu0
    %v728 = vadd.f32 0.0, %v727
    %v729 = vpop.f32.mrf.mxu0
    %v730 = vadd.f32 0.0, %v729
    %v731 = vpop.f32.mrf.mxu0
    %v732 = vadd.f32 0.0, %v731
    %v733 = vpop.f32.mrf.mxu0
    %v734 = vadd.f32 0.0, %v733
    %735 = vmatprep.mubr.bf16.mxu0 0
    %736 = vmatmul.mubr.bf16.gmra.mxu0 %v589
    %v737 = vpop.f32.mrf.mxu0
    %v738 = vadd.f32 0.0, %v737
    %v739 = vpop.f32.mrf.mxu0
    %v740 = vadd.f32 0.0, %v739
    %v741 = vpop.f32.mrf.mxu0
    %v742 = vadd.f32 0.0, %v741
    %v743 = vpop.f32.mrf.mxu0
    %v744 = vadd.f32 0.0, %v743
    %745 = vmatprep.mubr.bf16.mxu0 0
    %746 = vmatmul.mubr.bf16.gmra.mxu0 %v590
    %v747 = vpop.f32.mrf.mxu0
    %v748 = vadd.f32 0.0, %v747
    %v749 = vpop.f32.mrf.mxu0
    %v750 = vadd.f32 0.0, %v749
    %v751 = vpop.f32.mrf.mxu0
    %v752 = vadd.f32 0.0, %v751
    %v753 = vpop.f32.mrf.mxu0
    %v754 = vadd.f32 0.0, %v753
    %755 = vmatprep.mubr.bf16.mxu0 0
    %756 = vmatmul.mubr.bf16.gmra.mxu0 %v591
    %v757 = vpop.f32.mrf.mxu0
    %v758 = vadd.f32 0.0, %v757
    %v759 = vpop.f32.mrf.mxu0
    %v760 = vadd.f32 0.0, %v759
    %v761 = vpop.f32.mrf.mxu0
    %v762 = vadd.f32 0.0, %v761
    %v763 = vpop.f32.mrf.mxu0
    %v764 = vadd.f32 0.0, %v763
    %765 = vmatprep.mubr.bf16.mxu0 0
    %766 = vmatmul.mubr.bf16.gmra.mxu0 %v592
    %v767 = vpop.f32.mrf.mxu0
    %v768 = vadd.f32 0.0, %v767
    %v769 = vpop.f32.mrf.mxu0
    %v770 = vadd.f32 0.0, %v769
    %v771 = vpop.f32.mrf.mxu0
    %v772 = vadd.f32 0.0, %v771
    %v773 = vpop.f32.mrf.mxu0
    %v774 = vadd.f32 0.0, %v773
    %775 = vmatprep.mubr.bf16.mxu0 0
    %776 = vmatmul.mubr.bf16.gmra.mxu0 %v593
    %v777 = vpop.f32.mrf.mxu0
    %v778 = vadd.f32 0.0, %v777
    %v779 = vpop.f32.mrf.mxu0
    %v780 = vadd.f32 0.0, %v779
    %v781 = vpop.f32.mrf.mxu0
    %v782 = vadd.f32 0.0, %v781
    %v783 = vpop.f32.mrf.mxu0
    %v784 = vadd.f32 0.0, %v783
    %785 = vmatprep.mubr.bf16.mxu0 0
    %786 = vmatmul.mubr.bf16.gmra.mxu0 %v594
    %v787 = vpop.f32.mrf.mxu0
    %v788 = vadd.f32 0.0, %v787
    %v789 = vpop.f32.mrf.mxu0
    %v790 = vadd.f32 0.0, %v789
    %v791 = vpop.f32.mrf.mxu0
    %v792 = vpop.f32.mrf.mxu0
    %793 = vdwg.mxu0
    %v809 = vunpack.c.l.b16 %v495
    %v810 = vunpack.c.l.b16 %v496
    %v811 = vunpack.c.l.b16 %v497
    %v812 = vunpack.c.l.b16 %v498
    %v813 = vunpack.c.l.b16 %v499
    %v814 = vunpack.c.l.b16 %v500
    %v815 = vunpack.c.l.b16 %v501
    %v816 = vunpack.c.l.b16 %v502
    %v817 = vunpack.c.l.b16 %v503
    %v818 = vunpack.c.l.b16 %v504
    %v819 = vunpack.c.l.b16 %v505
    %v820 = vunpack.c.l.b16 %v506
    %v821 = vunpack.c.l.b16 %v507
    %v822 = vunpack.c.l.b16 %v508
    %v823 = vunpack.c.l.b16 %v509
    %v824 = vpack.c.b16 %v810, %v809
    %v825 = vpack.c.b16 %v812, %v811
    %v826 = vpack.c.b16 %v814, %v813
    %v827 = vpack.c.b16 %v816, %v815
    %v828 = vpack.c.b16 %v818, %v817
    %v829 = vpack.c.b16 %v820, %v819
    %v830 = vpack.c.b16 %v822, %v821
    %v831 = vpack.c.b16 %v823, %v823
    %v856 = vunpack.c.l.b16 %v525
    %v857 = vunpack.c.h.b16 %v525
    %v858 = vunpack.c.l.b16 %v526
    %v859 = vunpack.c.h.b16 %v526
    %v860 = vunpack.c.l.b16 %v527
    %v861 = vunpack.c.h.b16 %v527
    %v862 = vunpack.c.l.b16 %v528
    %v863 = vunpack.c.h.b16 %v528
    %v864 = vunpack.c.l.b16 %v529
    %v865 = vunpack.c.h.b16 %v529
    %v866 = vunpack.c.l.b16 %v530
    %v867 = vunpack.c.h.b16 %v530
    %v868 = vunpack.c.l.b16 %v531
    %v869 = vunpack.c.h.b16 %v531
    %v870 = vunpack.c.l.b16 %v532
    %v871 = vunpack.c.h.b16 %v532
    %v872 = vunpack.c.l.b16 %v533
    %v873 = vunpack.c.h.b16 %v533
    %v874 = vunpack.c.l.b16 %v534
    %v875 = vunpack.c.h.b16 %v534
    %v876 = vunpack.c.l.b16 %v535
    %v877 = vunpack.c.h.b16 %v535
    %v878 = vunpack.c.l.b16 %v536
    %v879 = vunpack.c.h.b16 %v536
    %v880 = vunpack.c.l.b16 %v537
    %v881 = vunpack.c.h.b16 %v537
    %v882 = vunpack.c.l.b16 %v538
    %v883 = vunpack.c.h.b16 %v538
    %v884 = vunpack.c.l.b16 %v539
    %v885 = vunpack.c.h.b16 %v539
    %v886 = vunpack.c.l.b16 %v540
    %v887 = vunpack.c.h.b16 %v540
    %v888 = vpack.c.b16 %v858, %v856
    %v889 = vpack.c.b16 %v859, %v857
    %v890 = vpack.c.b16 %v862, %v860
    %v891 = vpack.c.b16 %v863, %v861
    %v892 = vpack.c.b16 %v866, %v864
    %v893 = vpack.c.b16 %v867, %v865
    %v894 = vpack.c.b16 %v870, %v868
    %v895 = vpack.c.b16 %v871, %v869
    %v896 = vpack.c.b16 %v874, %v872
    %v897 = vpack.c.b16 %v875, %v873
    %v898 = vpack.c.b16 %v878, %v876
    %v899 = vpack.c.b16 %v879, %v877
    %v900 = vpack.c.b16 %v882, %v880
    %v901 = vpack.c.b16 %v883, %v881
    %v902 = vpack.c.b16 %v886, %v884
    %v903 = vpack.c.b16 %v887, %v885
    %920 = vmatprep.subr.bf16.mxu0 %v903
    %921 = vmatpush1.bf16.msra.mxu0 %v902
    %922 = vmatprep.subr.bf16.mxu0 %v901
    %923 = vmatpush1.bf16.msra.mxu0 %v900
    %924 = vmatprep.subr.bf16.mxu0 %v899
    %925 = vmatpush1.bf16.msra.mxu0 %v898
    %926 = vmatprep.subr.bf16.mxu0 %v897
    %927 = vmatpush1.bf16.msra.mxu0 %v896
    %928 = vmatprep.subr.bf16.mxu0 %v895
    %929 = vmatpush1.bf16.msra.mxu0 %v894
    %930 = vmatprep.subr.bf16.mxu0 %v893
    %931 = vmatpush1.bf16.msra.mxu0 %v892
    %932 = vmatprep.subr.bf16.mxu0 %v891
    %933 = vmatpush1.bf16.msra.mxu0 %v890
    %934 = vmatprep.subr.bf16.mxu0 %v889
    %935 = vmatpush1.bf16.msra.mxu0 %v888
    %936 = vmatprep.subr.bf16.mxu0 0
    %937 = vmatpush2.bf16.msra.mxu0 0
    %938 = vmatprep.subr.bf16.mxu0 0
    %939 = vmatpush2.bf16.msra.mxu0 0
    %940 = vmatprep.subr.bf16.mxu0 0
    %941 = vmatpush2.bf16.msra.mxu0 0
    %942 = vmatprep.subr.bf16.mxu0 0
    %943 = vmatpush2.bf16.msra.mxu0 0
    %944 = vmatprep.subr.bf16.mxu0 0
    %945 = vmatpush2.bf16.msra.mxu0 0
    %946 = vmatprep.subr.bf16.mxu0 0
    %947 = vmatpush2.bf16.msra.mxu0 0
    %948 = vmatprep.subr.bf16.mxu0 0
    %949 = vmatpush2.bf16.msra.mxu0 0
    %950 = vmatprep.subr.bf16.mxu0 0
    %951 = vmatpush2.bf16.msra.mxu0 0
    %952 = vmatprep.mubr.bf16.mxu0 0
    %953 = vmatmul.mubr.bf16.gmra.mxu0 %v824
    %v954 = vpop.f32.mrf.mxu0
    %v955 = vadd.f32 %v718, %v954
    %v956 = vpop.f32.mrf.mxu0
    %v957 = vadd.f32 %v720, %v956
    %v958 = vpop.f32.mrf.mxu0
    %v959 = vadd.f32 %v722, %v958
    %v960 = vpop.f32.mrf.mxu0
    %v961 = vadd.f32 %v724, %v960
    %962 = vmatprep.mubr.bf16.mxu0 0
    %963 = vmatmul.mubr.bf16.gmra.mxu0 %v825
    %v964 = vpop.f32.mrf.mxu0
    %v965 = vadd.f32 %v728, %v964
    %v966 = vpop.f32.mrf.mxu0
    %v967 = vadd.f32 %v730, %v966
    %v968 = vpop.f32.mrf.mxu0
    %v969 = vadd.f32 %v732, %v968
    %v970 = vpop.f32.mrf.mxu0
    %v971 = vadd.f32 %v734, %v970
    %972 = vmatprep.mubr.bf16.mxu0 0
    %973 = vmatmul.mubr.bf16.gmra.mxu0 %v826
    %v974 = vpop.f32.mrf.mxu0
    %v975 = vadd.f32 %v738, %v974
    %v976 = vpop.f32.mrf.mxu0
    %v977 = vadd.f32 %v740, %v976
    %v978 = vpop.f32.mrf.mxu0
    %v979 = vadd.f32 %v742, %v978
    %v980 = vpop.f32.mrf.mxu0
    %v981 = vadd.f32 %v744, %v980
    %982 = vmatprep.mubr.bf16.mxu0 0
    %983 = vmatmul.mubr.bf16.gmra.mxu0 %v827
    %v984 = vpop.f32.mrf.mxu0
    %v985 = vadd.f32 %v748, %v984
    %v986 = vpop.f32.mrf.mxu0
    %v987 = vadd.f32 %v750, %v986
    %v988 = vpop.f32.mrf.mxu0
    %v989 = vadd.f32 %v752, %v988
    %v990 = vpop.f32.mrf.mxu0
    %v991 = vadd.f32 %v754, %v990
    %992 = vmatprep.mubr.bf16.mxu0 0
    %993 = vmatmul.mubr.bf16.gmra.mxu0 %v828
    %v994 = vpop.f32.mrf.mxu0
    %v995 = vadd.f32 %v758, %v994
    %v996 = vpop.f32.mrf.mxu0
    %v997 = vadd.f32 %v760, %v996
    %v998 = vpop.f32.mrf.mxu0
    %v999 = vadd.f32 %v762, %v998
    %v1000 = vpop.f32.mrf.mxu0
    %v1001 = vadd.f32 %v764, %v1000
    %1002 = vmatprep.mubr.bf16.mxu0 0
    %1003 = vmatmul.mubr.bf16.gmra.mxu0 %v829
    %v1004 = vpop.f32.mrf.mxu0
    %v1005 = vadd.f32 %v768, %v1004
    %v1006 = vpop.f32.mrf.mxu0
    %v1007 = vadd.f32 %v770, %v1006
    %v1008 = vpop.f32.mrf.mxu0
    %v1009 = vadd.f32 %v772, %v1008
    %v1010 = vpop.f32.mrf.mxu0
    %v1011 = vadd.f32 %v774, %v1010
    %1012 = vmatprep.mubr.bf16.mxu0 0
    %1013 = vmatmul.mubr.bf16.gmra.mxu0 %v830
    %v1014 = vpop.f32.mrf.mxu0
    %v1015 = vadd.f32 %v778, %v1014
    %v1016 = vpop.f32.mrf.mxu0
    %v1017 = vadd.f32 %v780, %v1016
    %v1018 = vpop.f32.mrf.mxu0
    %v1019 = vadd.f32 %v782, %v1018
    %v1020 = vpop.f32.mrf.mxu0
    %v1021 = vadd.f32 %v784, %v1020
    %1022 = vmatprep.mubr.bf16.mxu0 0
    %1023 = vmatmul.mubr.bf16.gmra.mxu0 %v831
    %v1024 = vpop.f32.mrf.mxu0
    %v1025 = vadd.f32 %v788, %v1024
    %v1026 = vpop.f32.mrf.mxu0
    %v1027 = vadd.f32 %v790, %v1026
    %v1028 = vpop.f32.mrf.mxu0
    %v1029 = vpop.f32.mrf.mxu0
    %1030 = vdwg.mxu0
    %v1031 = vld [vmem:[%s5] sm:$0x3]
    %v1033 = vlaneseq
    %v1034 = vshrl.u32 %v1033, 7
    %v1035 = vsub.s32 0, %v1034
    %v1036 = vrot.slane %v1031, %v1035
    %v1037 = vlaneseq
    %v1038 = vshrl.u32 %v1037, 7
    %v1039 = vsub.s32 1, %v1038
    %v1040 = vrot.slane %v1031, %v1039
    %v1043 = vadd.f32 %v955, %v1036
    %v1044 = vadd.f32 %v957, %v1040
    %v1045 = vadd.f32 %v959, %v1036
    %v1046 = vadd.f32 %v961, %v1040
    %v1047 = vadd.f32 %v965, %v1036
    %v1048 = vadd.f32 %v967, %v1040
    %v1049 = vadd.f32 %v969, %v1036
    %v1050 = vadd.f32 %v971, %v1040
    %v1051 = vadd.f32 %v975, %v1036
    %v1052 = vadd.f32 %v977, %v1040
    %v1053 = vadd.f32 %v979, %v1036
    %v1054 = vadd.f32 %v981, %v1040
    %v1055 = vadd.f32 %v985, %v1036
    %v1056 = vadd.f32 %v987, %v1040
    %v1057 = vadd.f32 %v989, %v1036
    %v1058 = vadd.f32 %v991, %v1040
    %v1059 = vadd.f32 %v995, %v1036
    %v1060 = vadd.f32 %v997, %v1040
    %v1061 = vadd.f32 %v999, %v1036
    %v1062 = vadd.f32 %v1001, %v1040
    %v1063 = vadd.f32 %v1005, %v1036
    %v1064 = vadd.f32 %v1007, %v1040
    %v1065 = vadd.f32 %v1009, %v1036
    %v1066 = vadd.f32 %v1011, %v1040
    %v1067 = vadd.f32 %v1015, %v1036
    %v1068 = vadd.f32 %v1017, %v1040
    %v1069 = vadd.f32 %v1019, %v1036
    %v1070 = vadd.f32 %v1021, %v1040
    %v1071 = vadd.f32 %v1025, %v1036
    %v1072 = vadd.f32 %v1027, %v1040
    %v1073 = vadd.f32 %v1043, %v494
    %v1074 = vadd.f32 %v1045, %v494
    %v1075 = vadd.f32 %v1047, %v494
    %v1076 = vadd.f32 %v1049, %v494
    %v1077 = vadd.f32 %v1051, %v494
    %v1078 = vadd.f32 %v1053, %v494
    %v1079 = vadd.f32 %v1055, %v494
    %v1080 = vadd.f32 %v1057, %v494
    %v1081 = vadd.f32 %v1059, %v494
    %v1082 = vadd.f32 %v1061, %v494
    %v1083 = vadd.f32 %v1063, %v494
    %v1084 = vadd.f32 %v1065, %v494
    %v1085 = vadd.f32 %v1067, %v494
    %v1086 = vadd.f32 %v1069, %v494
    %v1087 = vadd.f32 %v1071, %v494
    %v1088 = vmax.f32 %v1073, 0.0
    %v1089 = vmax.f32 %v1074, 0.0
    %v1090 = vmax.f32 %v1075, 0.0
    %v1091 = vmax.f32 %v1076, 0.0
    %v1092 = vmax.f32 %v1077, 0.0
    %v1093 = vmax.f32 %v1078, 0.0
    %v1094 = vmax.f32 %v1079, 0.0
    %v1095 = vmax.f32 %v1080, 0.0
    %v1096 = vmax.f32 %v1081, 0.0
    %v1097 = vmax.f32 %v1082, 0.0
    %v1098 = vmax.f32 %v1083, 0.0
    %v1099 = vmax.f32 %v1084, 0.0
    %v1100 = vmax.f32 %v1085, 0.0
    %v1101 = vmax.f32 %v1086, 0.0
    %v1102 = vmax.f32 %v1087, 0.0
    %v1103 = vtanh.pop %v1044
    %v1104 = vtanh.pop %v1046
    %v1105 = vtanh.pop %v1048
    %v1106 = vtanh.pop %v1050
    %v1107 = vtanh.pop %v1052
    %v1108 = vtanh.pop %v1054
    %v1109 = vtanh.pop %v1056
    %v1110 = vtanh.pop %v1058
    %v1111 = vtanh.pop %v1060
    %v1112 = vtanh.pop %v1062
    %v1113 = vtanh.pop %v1064
    %v1114 = vtanh.pop %v1066
    %v1115 = vtanh.pop %v1068
    %v1116 = vtanh.pop %v1070
    %v1117 = vtanh.pop %v1072
    %v1118 = vmul.f32 %v1088, %v1103
    %v1119 = vmul.f32 %v1089, %v1104
    %v1120 = vmul.f32 %v1090, %v1105
    %v1121 = vmul.f32 %v1091, %v1106
    %v1122 = vmul.f32 %v1092, %v1107
    %v1123 = vmul.f32 %v1093, %v1108
    %v1124 = vmul.f32 %v1094, %v1109
    %v1125 = vmul.f32 %v1095, %v1110
    %v1126 = vmul.f32 %v1096, %v1111
    %v1127 = vmul.f32 %v1097, %v1112
    %v1128 = vmul.f32 %v1098, %v1113
    %v1129 = vmul.f32 %v1099, %v1114
    %v1130 = vmul.f32 %v1100, %v1115
    %v1131 = vmul.f32 %v1101, %v1116
    %v1132 = vmul.f32 %v1102, %v1117
    %v1133 = vmax.f32 %v1118, %v1122
    %v1134 = vmax.f32 %v1119, %v1123
    %v1135 = vmax.f32 %v1120, %v1124
    %v1136 = vmax.f32 %v1121, %v1125
    %v1137 = vmax.f32 %v1133, %v1126
    %v1138 = vmax.f32 %v1134, %v1127
    %v1139 = vmax.f32 %v1135, %v1128
    %v1140 = vmax.f32 %v1136, %v1129
    %v1141 = vmax.f32 %v1137, %v1130
    %v1142 = vmax.f32 %v1138, %v1131
    %v1143 = vmax.f32 %v1139, %v1132
    %v1144 = vmax.f32 %v1141, %v1142
    %v1145 = vmax.f32 %v1143, %v1140
    %v1146 = vmax.f32 %v1144, %v1145
    %v1147 = vpack.c.bf16 %v1146, %v1146
    %v1148 = vld [vmem:[#allocation15] sm:$0xf]
    %v1149 = vld [vmem:[#allocation15 + $0x4] sm:$0xf]
    %v1150 = vld [vmem:[#allocation15 + $0x8] sm:$0xf]
    %v1151 = vld [vmem:[#allocation15 + $0xc] sm:$0xf]
    %v1152 = vld [vmem:[#allocation15 + $0x10] sm:$0xf]
    %v1153 = vld [vmem:[#allocation15 + $0x14] sm:$0xf]
    %v1154 = vld [vmem:[#allocation15 + $0x18] sm:$0xf]
    %v1155 = vld [vmem:[#allocation15 + $0x1c] sm:$0xf]
    %v1156 = vld [vmem:[#allocation15 + $0x20] sm:$0xf]
    %v1157 = vld [vmem:[#allocation15 + $0x24] sm:$0xf]
    %v1158 = vld [vmem:[#allocation15 + $0x28] sm:$0xf]
    %v1159 = vld [vmem:[#allocation15 + $0x2c] sm:$0xf]
    %v1160 = vld [vmem:[#allocation15 + $0x30] sm:$0xf]
    %v1161 = vld [vmem:[#allocation15 + $0x34] sm:$0xf]
    %v1162 = vld [vmem:[#allocation15 + $0x38] sm:$0xf]
    %v1163 = vld [vmem:[#allocation15 + $0x3c] sm:$0xf]
    %v1164 = vld [vmem:[%s10] sm:$0x1]
    %v1166 = vlaneseq
    %v1167 = vshrl.u32 %v1166, 7
    %v1168 = vsub.s32 0, %v1167
    %v1169 = vrot.slane %v1164, %v1168
    %v1187 = vunpack.c.l.b16 %v1148
    %v1188 = vunpack.c.l.b16 %v1149
    %v1189 = vunpack.c.l.b16 %v1150
    %v1190 = vunpack.c.l.b16 %v1151
    %v1191 = vunpack.c.l.b16 %v1152
    %v1192 = vunpack.c.l.b16 %v1153
    %v1193 = vunpack.c.l.b16 %v1154
    %v1194 = vunpack.c.l.b16 %v1155
    %v1195 = vunpack.c.l.b16 %v1156
    %v1196 = vunpack.c.l.b16 %v1157
    %v1197 = vunpack.c.l.b16 %v1158
    %v1198 = vunpack.c.l.b16 %v1159
    %v1199 = vunpack.c.l.b16 %v1160
    %v1200 = vunpack.c.l.b16 %v1161
    %v1201 = vunpack.c.l.b16 %v1162
    %v1202 = vunpack.c.l.b16 %v1163
    %v1203 = vpack.c.b16 %v1188, %v1187
    %v1204 = vpack.c.b16 %v1190, %v1189
    %v1205 = vpack.c.b16 %v1192, %v1191
    %v1206 = vpack.c.b16 %v1194, %v1193
    %v1207 = vpack.c.b16 %v1196, %v1195
    %v1208 = vpack.c.b16 %v1198, %v1197
    %v1209 = vpack.c.b16 %v1200, %v1199
    %v1210 = vpack.c.b16 %v1202, %v1201
    %1219 = vmatprep.subr.bf16.mxu0 0
    %1220 = vmatpush1.bf16.msra.mxu0 %v1210
    %1221 = vmatprep.subr.bf16.mxu0 0
    %1222 = vmatpush1.bf16.msra.mxu0 %v1209
    %1223 = vmatprep.subr.bf16.mxu0 0
    %1224 = vmatpush1.bf16.msra.mxu0 %v1208
    %1225 = vmatprep.subr.bf16.mxu0 0
    %1226 = vmatpush1.bf16.msra.mxu0 %v1207
    %1227 = vmatprep.subr.bf16.mxu0 0
    %1228 = vmatpush1.bf16.msra.mxu0 %v1206
    %1229 = vmatprep.subr.bf16.mxu0 0
    %1230 = vmatpush1.bf16.msra.mxu0 %v1205
    %1231 = vmatprep.subr.bf16.mxu0 0
    %1232 = vmatpush1.bf16.msra.mxu0 %v1204
    %1233 = vmatprep.subr.bf16.mxu0 0
    %1234 = vmatpush1.bf16.msra.mxu0 %v1203
    %1235 = vmatprep.subr.bf16.mxu0 0
    %1236 = vmatpush2.bf16.msra.mxu0 0
    %1237 = vmatprep.subr.bf16.mxu0 0
    %1238 = vmatpush2.bf16.msra.mxu0 0
    %1239 = vmatprep.subr.bf16.mxu0 0
    %1240 = vmatpush2.bf16.msra.mxu0 0
    %1241 = vmatprep.subr.bf16.mxu0 0
    %1242 = vmatpush2.bf16.msra.mxu0 0
    %1243 = vmatprep.subr.bf16.mxu0 0
    %1244 = vmatpush2.bf16.msra.mxu0 0
    %1245 = vmatprep.subr.bf16.mxu0 0
    %1246 = vmatpush2.bf16.msra.mxu0 0
    %1247 = vmatprep.subr.bf16.mxu0 0
    %1248 = vmatpush2.bf16.msra.mxu0 0
    %1249 = vmatprep.subr.bf16.mxu0 0
    %1250 = vmatpush2.bf16.msra.mxu0 0
    %1251 = vmatprep.mubr.bf16.mxu0 0
    %1252 = vmatmul.mubr.bf16.gmra.mxu0 %v1147
    %v1253 = vpop.f32.mrf.mxu0
    %v1254 = vadd.f32 %v1169, %v1253
    %v1255 = vpop.f32.mrf.mxu0
    %v1256 = vpop.f32.mrf.mxu0
    %v1257 = vpop.f32.mrf.mxu0
    %1258 = vdwg.mxu0
    %1259 = vst [vmem:[#allocation16] sm:$0xff] %v1254
    // Predicated region
    $region70: #{tpu_custom_call.1} parent=1 // pred_check
      _
    $region71: #{tpu_custom_call.1} parent=1 // pred_check_branch
      %1261 = sbr.rel (0) target = $region73
    $region72: #{tpu_custom_call.1} parent=1 // pred_region
      %s1263 = ssub.s32 128, 128
      %1264 = vsyncadd [#allocation6], %s1263
      %s1266 = sshll.u32 [#allocation16], 4
      %s1267 = int_to_ptr.vmem [resolvable:$true] %s1266
      %1269 = dma.vmem_to_hbm [thread:$0]  %s1267, 128, %s11, [#allocation6]
    $region73: #{tpu_custom_call.1} parent=1 // pred_fallthru
      _
    // Predicated region
    $region74: #{tpu_custom_call.1} parent=1 // pred_check
      _
    $region75: #{tpu_custom_call.1} parent=1 // pred_check_branch
      %1271 = sbr.rel (0) target = $region77
    $region76: #{tpu_custom_call.1} parent=1 // pred_region
      %1272 = dma.done [#allocation6], 128
    $region77: #{tpu_custom_call.1} parent=1 // pred_fallthru
      _
    %1273 = vsyncpa [#allocation5], 1
    %1274 = vsyncpa [#allocation8], 1
    %1275 = vsyncpa [#allocation11], 1
    %1276 = vsyncpa [#allocation14], 1
    %1277 = vsyncpa [#allocation6], 1

</llo_original>
